<compile_context>
chip_gen: v7x
topology: tpu7x:2x2x1
jax: 0.10.0
libtpu: 0.0.40
codegen_flags: <defaults>
</compile_context>

<pallas_src>
import jax
import jax.numpy as jnp
from jax import lax
from jax.experimental import pallas as pl
from jax.experimental.pallas import tpu as pltpu

LN_EPS = 1e-5


def _layernorm(h, w, b):
    """Fused LayerNorm over the last dim.

    One elementwise pass (h*h) + two back-to-back cross-lane reductions, then
    var = E[h^2] - E[h]^2 and the affine folded into a single multiply-add.
    """
    inv_c = 1.0 / h.shape[-1]
    mu = jnp.sum(h, axis=-1, keepdims=True) * inv_c
    ex2 = jnp.sum(h * h, axis=-1, keepdims=True) * inv_c
    var = ex2 - mu * mu
    a = lax.rsqrt(var + LN_EPS) * w          # (..., C)
    return h * a + (b - mu * a)


def _mish(z):
    """mish(z) = z * tanh(softplus(z)) = z * (u^2 + 2u) / (u^2 + 2u + 2), u = e^z.

    One EUP exp + one approx reciprocal instead of exp + log1p + tanh.
    """
    u = jnp.exp(jnp.minimum(z, 20.0))        # clamp avoids overflow; exact for z <= 20
    num = u * (u + 2.0)
    t = num * pl.reciprocal(num + 2.0, approx=True)
    return jnp.where(z > 20.0, z, z * t)     # for z > 20, tanh(softplus(z)) == 1 in f32


def mlp_block_kernel(x_ref, ln1w_ref, ln1b_ref, watt_ref,
                     ln2w_ref, ln2b_ref, w1_ref, b1_ref, w2_ref, b2_ref,
                     gamma_ref, o_ref):
    x = x_ref[...]                                                     # (NB, L, C)
    nb, l, c = x.shape

    # pre_norm
    h = _layernorm(x, ln1w_ref[...], ln1b_ref[...])                    # (NB, L, C)

    # att: Linear over the L axis.  att[n, m, c] = sum_l W[m, l] * h[n, l, c]
    # (b_att is constant over C and cancels exactly in post_norm -> omitted)
    watt = watt_ref[...]                                               # (L, L)
    if nb == 1:
        att = jnp.dot(watt, h[0], preferred_element_type=jnp.float32)[None]
    else:
        wb = jnp.broadcast_to(watt, (nb, l, l))
        att = lax.dot_general(wb, h, (((2,), (1,)), ((0,), (0,))),
                              preferred_element_type=jnp.float32)      # (NB, L, C)

    # post_norm, then fold (NB, L) -> rows so the MLP matmuls are batched.
    h2 = _layernorm(att, ln2w_ref[...], ln2b_ref[...]).reshape(nb * l, c)

    # mlp: Linear(C -> mid) -> Mish -> Linear(mid -> C)   (dropout p=0 -> identity)
    z = jnp.dot(h2, w1_ref[...], preferred_element_type=jnp.float32) + b1_ref[...]
    m = _mish(z)
    mlp_out = jnp.dot(m, w2_ref[...], preferred_element_type=jnp.float32) + b2_ref[...]

    # layer-scaled residual; single large store per grid step.
    o_ref[...] = x + gamma_ref[...] * mlp_out.reshape(nb, l, c)


def _choose_batch_block(n, l, c, itemsize=4, max_block_bytes=4 << 20):
    # At most 2 grid steps (2 parallel steps feed v7x's two TensorCores; on
    # v5e/v6e it just minimizes per-step overhead), capped so the double-buffered
    # x/out blocks stay comfortably inside scoped VMEM on every generation.
    steps = min(n, 2)
    nb = -(-n // steps)                                   # ceil(n / steps)
    cap = max(1, max_block_bytes // max(4 * l * c * itemsize, 1))
    return max(1, min(nb, cap))


def mlp_block(x, params, batch_block=None):
    N, L, C = x.shape
    mid = params["w1"].shape[1]
    NB = batch_block if batch_block is not None else _choose_batch_block(N, L, C)
    grid = (pl.cdiv(N, NB),)

    def const_spec(shape):
        zeros = (0,) * len(shape)
        return pl.BlockSpec(shape, lambda n, _z=zeros: _z)

    kernel = pl.pallas_call(
        mlp_block_kernel,
        out_shape=jax.ShapeDtypeStruct((N, L, C), x.dtype),
        grid=grid,
        in_specs=[
            pl.BlockSpec((NB, L, C), lambda n: (n, 0, 0)),   # x (batch block)
            const_spec((1, C)), const_spec((1, C)),          # ln1 weight / bias
            const_spec((L, L)),                              # att weight (bias cancels)
            const_spec((1, C)), const_spec((1, C)),          # ln2 weight / bias
            const_spec((C, mid)), const_spec((1, mid)),      # mlp fc1 weight / bias
            const_spec((mid, C)), const_spec((1, C)),        # mlp fc2 weight / bias
            const_spec((1, C)),                              # gamma
        ],
        out_specs=pl.BlockSpec((NB, L, C), lambda n: (n, 0, 0)),
        compiler_params=pltpu.CompilerParams(
            dimension_semantics=("parallel",),
            vmem_limit_bytes=32 * 1024 * 1024),
    )
    return kernel(x, params["ln1_w"], params["ln1_b"], params["w_att"],
                  params["ln2_w"], params["ln2_b"],
                  params["w1"], params["b1"], params["w2"], params["b2"],
                  params["gamma"])


def ref_forward(x, p):
    """Pure-JAX reference of the same forward pass (includes b_att, exact Mish)."""
    def ln(h, w, b):
        mu = h.mean(-1, keepdims=True)
        var = ((h - mu) ** 2).mean(-1, keepdims=True)
        return (h - mu) / jnp.sqrt(var + LN_EPS) * w + b

    h = ln(x, p["ln1_w"][0], p["ln1_b"][0])
    att = jnp.einsum("ml,blc->bmc", p["w_att"], h) + p["b_att"][None]   # bias over L
    h2 = ln(att, p["ln2_w"][0], p["ln2_b"][0])
    z = h2 @ p["w1"] + p["b1"][0]
    m = z * jnp.tanh(jax.nn.softplus(z))
    out = m @ p["w2"] + p["b2"][0]
    return x + p["gamma"][0] * out


def init_params(key, in_channels, in_dims, mid_channels, init_values=1e-4):
    ks = jax.random.split(key, 6)
    s = 0.05
    return {
        "ln1_w": jnp.ones((1, in_channels), jnp.float32),
        "ln1_b": jnp.zeros((1, in_channels), jnp.float32),
        # att: Linear(in_dims, in_dims) acting along L.  Stored as (L_out, L_in).
        "w_att": s * jax.random.normal(ks[0], (in_dims, in_dims), jnp.float32),
        # b_att is kept for the reference; it cancels in post_norm so the kernel skips it.
        "b_att": s * jax.random.normal(ks[1], (in_dims, 1), jnp.float32),
        "ln2_w": jnp.ones((1, in_channels), jnp.float32),
        "ln2_b": jnp.zeros((1, in_channels), jnp.float32),
        # mlp fc1: torch weight (mid, C) -> stored transposed (C, mid) for x @ W.
        "w1": s * jax.random.normal(ks[2], (in_channels, mid_channels), jnp.float32),
        "b1": s * jax.random.normal(ks[3], (1, mid_channels), jnp.float32),
        # mlp fc2: torch weight (C, mid) -> stored transposed (mid, C).
        "w2": s * jax.random.normal(ks[4], (mid_channels, in_channels), jnp.float32),
        "b2": s * jax.random.normal(ks[5], (1, in_channels), jnp.float32),
        "gamma": init_values * jnp.ones((1, in_channels), jnp.float32),
    }


if __name__ == "__main__":
    N, L, C, MID = 2, 16, 32, 64   # batch, in_dims (seq), in_channels, mid_channels

    key = jax.random.PRNGKey(0)
    kx, kp = jax.random.split(key)
    x = jax.random.normal(kx, (N, L, C), jnp.float32)
    params = init_params(kp, in_channels=C, in_dims=L, mid_channels=MID)

    out = mlp_block(x, params)
    out = jax.block_until_ready(out)

    ref = ref_forward(x, params)
    assert out.shape == (N, L, C)
    assert jnp.allclose(out, ref, atol=1e-5, rtol=1e-5), "mismatch vs. JAX reference"

    print("KERNEL_OK")
</pallas_src>

<mosaic_0001>
module attributes {stable_mosaic.version = 11 : i64} {
  func.func @mlp_block_kernel(%arg0: i32, %arg1: memref<1x16x32xf32, #tpu.memory_space<vmem>>, %arg2: memref<1x32xf32, #tpu.memory_space<vmem>>, %arg3: memref<1x32xf32, #tpu.memory_space<vmem>>, %arg4: memref<16x16xf32, #tpu.memory_space<vmem>>, %arg5: memref<1x32xf32, #tpu.memory_space<vmem>>, %arg6: memref<1x32xf32, #tpu.memory_space<vmem>>, %arg7: memref<32x64xf32, #tpu.memory_space<vmem>>, %arg8: memref<1x64xf32, #tpu.memory_space<vmem>>, %arg9: memref<64x32xf32, #tpu.memory_space<vmem>>, %arg10: memref<1x32xf32, #tpu.memory_space<vmem>>, %arg11: memref<1x32xf32, #tpu.memory_space<vmem>>, %arg12: memref<1x16x32xf32, #tpu.memory_space<vmem>>) attributes {dimension_semantics = [#tpu.dimension_semantics<parallel>], iteration_bounds = array<i64: 2>, scalar_prefetch = 0 : i64, scratch_operands = 0 : i64, tpu.core_type = #tpu.core_type<tc>, window_params = [{transform_indices = @transform_0, window_bounds = array<i64: 1, 16, 32>}, {pipeline_mode = #tpu.pipeline_mode<synchronous>, transform_indices = @transform_1, window_bounds = array<i64: 1, 32>}, {pipeline_mode = #tpu.pipeline_mode<synchronous>, transform_indices = @transform_2, window_bounds = array<i64: 1, 32>}, {pipeline_mode = #tpu.pipeline_mode<synchronous>, transform_indices = @transform_3, window_bounds = array<i64: 16, 16>}, {pipeline_mode = #tpu.pipeline_mode<synchronous>, transform_indices = @transform_4, window_bounds = array<i64: 1, 32>}, {pipeline_mode = #tpu.pipeline_mode<synchronous>, transform_indices = @transform_5, window_bounds = array<i64: 1, 32>}, {pipeline_mode = #tpu.pipeline_mode<synchronous>, transform_indices = @transform_6, window_bounds = array<i64: 32, 64>}, {pipeline_mode = #tpu.pipeline_mode<synchronous>, transform_indices = @transform_7, window_bounds = array<i64: 1, 64>}, {pipeline_mode = #tpu.pipeline_mode<synchronous>, transform_indices = @transform_8, window_bounds = array<i64: 64, 32>}, {pipeline_mode = #tpu.pipeline_mode<synchronous>, transform_indices = @transform_9, window_bounds = array<i64: 1, 32>}, {pipeline_mode = #tpu.pipeline_mode<synchronous>, transform_indices = @transform_10, window_bounds = array<i64: 1, 32>}, {transform_indices = @transform_11, window_bounds = array<i64: 1, 16, 32>}]} {
    %c0 = arith.constant 0 : index
    %c0_0 = arith.constant 0 : index
    %c0_1 = arith.constant 0 : index
    %0 = vector.load %arg1[%c0, %c0_0, %c0_1] : memref<1x16x32xf32, #tpu.memory_space<vmem>>, vector<1x16x32xf32>
    %c0_2 = arith.constant 0 : index
    %c0_3 = arith.constant 0 : index
    %1 = vector.load %arg2[%c0_2, %c0_3] : memref<1x32xf32, #tpu.memory_space<vmem>>, vector<1x32xf32>
    %c0_4 = arith.constant 0 : index
    %c0_5 = arith.constant 0 : index
    %2 = vector.load %arg3[%c0_4, %c0_5] : memref<1x32xf32, #tpu.memory_space<vmem>>, vector<1x32xf32>
    %cst = arith.constant dense<0.000000e+00> : vector<1x16xf32>
    %3 = vector.multi_reduction <add>, %0, %cst [2] : vector<1x16x32xf32> to vector<1x16xf32>
    %4 = vector.shape_cast %3 : vector<1x16xf32> to vector<1x16x1xf32>
    %cst_6 = arith.constant 3.125000e-02 : f32
    %5 = vector.broadcast %cst_6 : f32 to vector<1x16x1xf32>
    %6 = arith.mulf %4, %5 : vector<1x16x1xf32>
    %7 = arith.mulf %0, %0 : vector<1x16x32xf32>
    %cst_7 = arith.constant dense<0.000000e+00> : vector<1x16xf32>
    %8 = vector.multi_reduction <add>, %7, %cst_7 [2] : vector<1x16x32xf32> to vector<1x16xf32>
    %9 = vector.shape_cast %8 : vector<1x16xf32> to vector<1x16x1xf32>
    %cst_8 = arith.constant 3.125000e-02 : f32
    %10 = vector.broadcast %cst_8 : f32 to vector<1x16x1xf32>
    %11 = arith.mulf %9, %10 : vector<1x16x1xf32>
    %12 = arith.mulf %6, %6 : vector<1x16x1xf32>
    %13 = arith.subf %11, %12 : vector<1x16x1xf32>
    %cst_9 = arith.constant 9.99999974E-6 : f32
    %14 = vector.broadcast %cst_9 : f32 to vector<1x16x1xf32>
    %15 = arith.addf %13, %14 : vector<1x16x1xf32>
    %16 = math.rsqrt %15 : vector<1x16x1xf32>
    %17 = vector.shape_cast %1 : vector<1x32xf32> to vector<1x1x32xf32>
    %18 = vector.broadcast %16 : vector<1x16x1xf32> to vector<1x16x32xf32>
    %19 = vector.broadcast %17 : vector<1x1x32xf32> to vector<1x16x32xf32>
    %20 = arith.mulf %18, %19 : vector<1x16x32xf32>
    %21 = arith.mulf %0, %20 : vector<1x16x32xf32>
    %22 = vector.broadcast %6 : vector<1x16x1xf32> to vector<1x16x32xf32>
    %23 = arith.mulf %22, %20 : vector<1x16x32xf32>
    %24 = vector.shape_cast %2 : vector<1x32xf32> to vector<1x1x32xf32>
    %25 = vector.broadcast %24 : vector<1x1x32xf32> to vector<1x16x32xf32>
    %26 = arith.subf %25, %23 : vector<1x16x32xf32>
    %27 = arith.addf %21, %26 : vector<1x16x32xf32>
    %c0_10 = arith.constant 0 : index
    %c0_11 = arith.constant 0 : index
    %28 = vector.load %arg4[%c0_10, %c0_11] : memref<16x16xf32, #tpu.memory_space<vmem>>, vector<16x16xf32>
    %29 = vector.shape_cast %27 : vector<1x16x32xf32> to vector<16x32xf32>
    %cst_12 = arith.constant dense<0.000000e+00> : vector<16x32xf32>
    %30 = tpu.matmul %28, %29, %cst_12 {dimension_numbers = #tpu.dot_dimension_numbers<[1], [0], [0], [1], [0, 0, 1, 1], [], []>} : vector<16x16xf32>, vector<16x32xf32>, vector<16x32xf32> -> vector<16x32xf32>
    %31 = vector.shape_cast %30 : vector<16x32xf32> to vector<1x16x32xf32>
    %c0_13 = arith.constant 0 : index
    %c0_14 = arith.constant 0 : index
    %32 = vector.load %arg5[%c0_13, %c0_14] : memref<1x32xf32, #tpu.memory_space<vmem>>, vector<1x32xf32>
    %c0_15 = arith.constant 0 : index
    %c0_16 = arith.constant 0 : index
    %33 = vector.load %arg6[%c0_15, %c0_16] : memref<1x32xf32, #tpu.memory_space<vmem>>, vector<1x32xf32>
    %cst_17 = arith.constant dense<0.000000e+00> : vector<1x16xf32>
    %34 = vector.multi_reduction <add>, %31, %cst_17 [2] : vector<1x16x32xf32> to vector<1x16xf32>
    %35 = vector.shape_cast %34 : vector<1x16xf32> to vector<1x16x1xf32>
    %cst_18 = arith.constant 3.125000e-02 : f32
    %36 = vector.broadcast %cst_18 : f32 to vector<1x16x1xf32>
    %37 = arith.mulf %35, %36 : vector<1x16x1xf32>
    %38 = arith.mulf %31, %31 : vector<1x16x32xf32>
    %cst_19 = arith.constant dense<0.000000e+00> : vector<1x16xf32>
    %39 = vector.multi_reduction <add>, %38, %cst_19 [2] : vector<1x16x32xf32> to vector<1x16xf32>
    %40 = vector.shape_cast %39 : vector<1x16xf32> to vector<1x16x1xf32>
    %cst_20 = arith.constant 3.125000e-02 : f32
    %41 = vector.broadcast %cst_20 : f32 to vector<1x16x1xf32>
    %42 = arith.mulf %40, %41 : vector<1x16x1xf32>
    %43 = arith.mulf %37, %37 : vector<1x16x1xf32>
    %44 = arith.subf %42, %43 : vector<1x16x1xf32>
    %cst_21 = arith.constant 9.99999974E-6 : f32
    %45 = vector.broadcast %cst_21 : f32 to vector<1x16x1xf32>
    %46 = arith.addf %44, %45 : vector<1x16x1xf32>
    %47 = math.rsqrt %46 : vector<1x16x1xf32>
    %48 = vector.shape_cast %32 : vector<1x32xf32> to vector<1x1x32xf32>
    %49 = vector.broadcast %47 : vector<1x16x1xf32> to vector<1x16x32xf32>
    %50 = vector.broadcast %48 : vector<1x1x32xf32> to vector<1x16x32xf32>
    %51 = arith.mulf %49, %50 : vector<1x16x32xf32>
    %52 = arith.mulf %31, %51 : vector<1x16x32xf32>
    %53 = vector.broadcast %37 : vector<1x16x1xf32> to vector<1x16x32xf32>
    %54 = arith.mulf %53, %51 : vector<1x16x32xf32>
    %55 = vector.shape_cast %33 : vector<1x32xf32> to vector<1x1x32xf32>
    %56 = vector.broadcast %55 : vector<1x1x32xf32> to vector<1x16x32xf32>
    %57 = arith.subf %56, %54 : vector<1x16x32xf32>
    %58 = arith.addf %52, %57 : vector<1x16x32xf32>
    %59 = vector.shape_cast %58 : vector<1x16x32xf32> to vector<16x32xf32>
    %c0_22 = arith.constant 0 : index
    %c0_23 = arith.constant 0 : index
    %60 = vector.load %arg7[%c0_22, %c0_23] : memref<32x64xf32, #tpu.memory_space<vmem>>, vector<32x64xf32>
    %cst_24 = arith.constant dense<0.000000e+00> : vector<16x64xf32>
    %61 = tpu.matmul %59, %60, %cst_24 {dimension_numbers = #tpu.dot_dimension_numbers<[1], [0], [0], [1], [0, 0, 1, 1], [], []>} : vector<16x32xf32>, vector<32x64xf32>, vector<16x64xf32> -> vector<16x64xf32>
    %c0_25 = arith.constant 0 : index
    %c0_26 = arith.constant 0 : index
    %62 = vector.load %arg8[%c0_25, %c0_26] : memref<1x64xf32, #tpu.memory_space<vmem>>, vector<1x64xf32>
    %63 = vector.broadcast %62 : vector<1x64xf32> to vector<16x64xf32>
    %64 = arith.addf %61, %63 : vector<16x64xf32>
    %cst_27 = arith.constant 2.000000e+01 : f32
    %65 = vector.broadcast %cst_27 : f32 to vector<16x64xf32>
    %66 = arith.minimumf %64, %65 : vector<16x64xf32>
    %67 = math.exp %66 : vector<16x64xf32>
    %cst_28 = arith.constant 2.000000e+00 : f32
    %68 = vector.broadcast %cst_28 : f32 to vector<16x64xf32>
    %69 = arith.addf %67, %68 : vector<16x64xf32>
    %70 = arith.mulf %67, %69 : vector<16x64xf32>
    %cst_29 = arith.constant 2.000000e+00 : f32
    %71 = vector.broadcast %cst_29 : f32 to vector<16x64xf32>
    %72 = arith.addf %70, %71 : vector<16x64xf32>
    %73 = tpu.reciprocal %72 {approx = true} : vector<16x64xf32> -> vector<16x64xf32>
    %74 = arith.mulf %70, %73 : vector<16x64xf32>
    %cst_30 = arith.constant 2.000000e+01 : f32
    %75 = vector.broadcast %cst_30 : f32 to vector<16x64xf32>
    %76 = arith.cmpf ogt, %64, %75 : vector<16x64xf32>
    %77 = arith.mulf %64, %74 : vector<16x64xf32>
    %78 = arith.select %76, %64, %77 : vector<16x64xi1>, vector<16x64xf32>
    %c0_31 = arith.constant 0 : index
    %c0_32 = arith.constant 0 : index
    %79 = vector.load %arg9[%c0_31, %c0_32] : memref<64x32xf32, #tpu.memory_space<vmem>>, vector<64x32xf32>
    %cst_33 = arith.constant dense<0.000000e+00> : vector<16x32xf32>
    %80 = tpu.matmul %78, %79, %cst_33 {dimension_numbers = #tpu.dot_dimension_numbers<[1], [0], [0], [1], [0, 0, 1, 1], [], []>} : vector<16x64xf32>, vector<64x32xf32>, vector<16x32xf32> -> vector<16x32xf32>
    %c0_34 = arith.constant 0 : index
    %c0_35 = arith.constant 0 : index
    %81 = vector.load %arg10[%c0_34, %c0_35] : memref<1x32xf32, #tpu.memory_space<vmem>>, vector<1x32xf32>
    %82 = vector.broadcast %81 : vector<1x32xf32> to vector<16x32xf32>
    %83 = arith.addf %80, %82 : vector<16x32xf32>
    %c0_36 = arith.constant 0 : index
    %c0_37 = arith.constant 0 : index
    %84 = vector.load %arg11[%c0_36, %c0_37] : memref<1x32xf32, #tpu.memory_space<vmem>>, vector<1x32xf32>
    %85 = vector.shape_cast %83 : vector<16x32xf32> to vector<1x16x32xf32>
    %86 = vector.shape_cast %84 : vector<1x32xf32> to vector<1x1x32xf32>
    %87 = vector.broadcast %86 : vector<1x1x32xf32> to vector<1x16x32xf32>
    %88 = arith.mulf %87, %85 : vector<1x16x32xf32>
    %89 = arith.addf %0, %88 : vector<1x16x32xf32>
    %c0_38 = arith.constant 0 : index
    %c0_39 = arith.constant 0 : index
    %c0_40 = arith.constant 0 : index
    %90 = vector.load %arg12[%c0_38, %c0_39, %c0_40] : memref<1x16x32xf32, #tpu.memory_space<vmem>>, vector<1x16x32xf32>
    tpu.vector_store %arg12[%c0_38, %c0_39, %c0_40], %89 {strides = array<i32>} : memref<1x16x32xf32, #tpu.memory_space<vmem>>, vector<1x16x32xf32>,
    return
  }
  func.func @transform_0(%arg0: i32) -> (i32, i32, i32) {
    %c0_i32 = arith.constant 0 : i32
    %c0_i32_0 = arith.constant 0 : i32
    %c0_i32_1 = arith.constant 0 : i32
    return %arg0, %c0_i32, %c0_i32_0 : i32, i32, i32
  }
  func.func @transform_1(%arg0: i32) -> (i32, i32) {
    %c0_i32 = arith.constant 0 : i32
    %c0_i32_0 = arith.constant 0 : i32
    %c0_i32_1 = arith.constant 0 : i32
    return %c0_i32, %c0_i32_0 : i32, i32
  }
  func.func @transform_2(%arg0: i32) -> (i32, i32) {
    %c0_i32 = arith.constant 0 : i32
    %c0_i32_0 = arith.constant 0 : i32
    %c0_i32_1 = arith.constant 0 : i32
    return %c0_i32, %c0_i32_0 : i32, i32
  }
  func.func @transform_3(%arg0: i32) -> (i32, i32) {
    %c0_i32 = arith.constant 0 : i32
    %c0_i32_0 = arith.constant 0 : i32
    %c0_i32_1 = arith.constant 0 : i32
    return %c0_i32, %c0_i32_0 : i32, i32
  }
  func.func @transform_4(%arg0: i32) -> (i32, i32) {
    %c0_i32 = arith.constant 0 : i32
    %c0_i32_0 = arith.constant 0 : i32
    %c0_i32_1 = arith.constant 0 : i32
    return %c0_i32, %c0_i32_0 : i32, i32
  }
  func.func @transform_5(%arg0: i32) -> (i32, i32) {
    %c0_i32 = arith.constant 0 : i32
    %c0_i32_0 = arith.constant 0 : i32
    %c0_i32_1 = arith.constant 0 : i32
    return %c0_i32, %c0_i32_0 : i32, i32
  }
  func.func @transform_6(%arg0: i32) -> (i32, i32) {
    %c0_i32 = arith.constant 0 : i32
    %c0_i32_0 = arith.constant 0 : i32
    %c0_i32_1 = arith.constant 0 : i32
    return %c0_i32, %c0_i32_0 : i32, i32
  }
  func.func @transform_7(%arg0: i32) -> (i32, i32) {
    %c0_i32 = arith.constant 0 : i32
    %c0_i32_0 = arith.constant 0 : i32
    %c0_i32_1 = arith.constant 0 : i32
    return %c0_i32, %c0_i32_0 : i32, i32
  }
  func.func @transform_8(%arg0: i32) -> (i32, i32) {
    %c0_i32 = arith.constant 0 : i32
    %c0_i32_0 = arith.constant 0 : i32
    %c0_i32_1 = arith.constant 0 : i32
    return %c0_i32, %c0_i32_0 : i32, i32
  }
  func.func @transform_9(%arg0: i32) -> (i32, i32) {
    %c0_i32 = arith.constant 0 : i32
    %c0_i32_0 = arith.constant 0 : i32
    %c0_i32_1 = arith.constant 0 : i32
    return %c0_i32, %c0_i32_0 : i32, i32
  }
  func.func @transform_10(%arg0: i32) -> (i32, i32) {
    %c0_i32 = arith.constant 0 : i32
    %c0_i32_0 = arith.constant 0 : i32
    %c0_i32_1 = arith.constant 0 : i32
    return %c0_i32, %c0_i32_0 : i32, i32
  }
  func.func @transform_11(%arg0: i32) -> (i32, i32, i32) {
    %c0_i32 = arith.constant 0 : i32
    %c0_i32_0 = arith.constant 0 : i32
    %c0_i32_1 = arith.constant 0 : i32
    return %arg0, %c0_i32, %c0_i32_0 : i32, i32, i32
  }
}

</mosaic_0001>

<llo_original>
// kernel: tpu_custom_call.1
$region0: #{tpu_custom_call.1}
  #allocation0 [shape = 'u32[]', space=smem, size = 0x4, offset = 0x4, fixed_abs, tag = 'smem constant byte address 0x4 - core index']
  #allocation1 [shape = 'u32[144,128]{1,0:T(1,128)}', space=vmem, size = 0x12000, scoped, tag = 'internal scratch']
  %s0 = inlined_call_operand.vmem [shape: f32[2,16,32], index: 0, kind: input, shape index: {}]
  %s1 = inlined_call_operand.vmem [shape: f32[1,32], index: 1, kind: input, shape index: {}]
  %s2 = inlined_call_operand.vmem [shape: f32[1,32], index: 2, kind: input, shape index: {}]
  %s3 = inlined_call_operand.vmem [shape: f32[16,16], index: 3, kind: input, shape index: {}]
  %s4 = inlined_call_operand.vmem [shape: f32[1,32], index: 4, kind: input, shape index: {}]
  %s5 = inlined_call_operand.vmem [shape: f32[1,32], index: 5, kind: input, shape index: {}]
  %s6 = inlined_call_operand.vmem [shape: f32[32,64], index: 6, kind: input, shape index: {}]
  %s7 = inlined_call_operand.vmem [shape: f32[1,64], index: 7, kind: input, shape index: {}]
  %s8 = inlined_call_operand.vmem [shape: f32[64,32], index: 8, kind: input, shape index: {}]
  %s9 = inlined_call_operand.vmem [shape: f32[1,32], index: 9, kind: input, shape index: {}]
  %s10 = inlined_call_operand.vmem [shape: f32[1,32], index: 10, kind: input, shape index: {}]
  %s11 = inlined_call_operand.hbm [shape: f32[2,16,32], index: 11, kind: output, shape index: {}]
  %s12 = sld [smem:[#allocation0]]
  $region77: #{tpu_custom_call.1} parent=0
    _
  %s14 = ssub.s32 1, %s12
  %s15 = scalar_select 0, %s14, %s12
  $region1: #{tpu_custom_call.1} parent=0
    #allocation2 [shape = 'u8[16384]{0}', space=vmem, size = 0x4000, scoped, tag = 'output window, operand 0']
    #allocation3 [shape = 's32[2]{0}', space=sflag, size = 0x8, scoped, tag = 'scoped memory for tpu_custom_call.1']
    %16 = vsyncpa [#allocation3], 0
    %s17 = scalar_lea.sflag [#allocation3], 1
    %18 = vsyncpa %s17, 0
    loop: start=0, step=1, limit=4
    $region2: #{tpu_custom_call.1} parent=1 // loop_pre_header
      _
    $region3: #{tpu_custom_call.1} parent=1 // loop_header
      %s20 = sphi 0, %s24
      %p21 = scmp.ge.s32.totalorder %s20, 4
      %s30 = sphi 0, %s32
      %s33 = sphi 0, %s30
      %s34 = sphi 0, %s33
      %s50 = sphi 0, %s34
      %s54 = sphi 0, %s54
      %s56 = sphi 0, %s54
      %s57 = sphi 0, %s56
      %s71 = sphi 0, %s57
      %s75 = sphi 0, %s75
      %s77 = sphi 0, %s75
      %s78 = sphi 0, %s77
      %s92 = sphi 0, %s78
      %s96 = sphi 0, %s96
      %s98 = sphi 0, %s96
      %s99 = sphi 0, %s98
      %s113 = sphi 0, %s99
      %s117 = sphi 0, %s117
      %s119 = sphi 0, %s117
      %s120 = sphi 0, %s119
      %s134 = sphi 0, %s120
      %s138 = sphi 0, %s138
      %s140 = sphi 0, %s138
      %s141 = sphi 0, %s140
      %s155 = sphi 0, %s141
      %s159 = sphi 0, %s159
      %s161 = sphi 0, %s159
      %s162 = sphi 0, %s161
      %s176 = sphi 0, %s162
      %s180 = sphi 0, %s180
      %s182 = sphi 0, %s180
      %s183 = sphi 0, %s182
      %s197 = sphi 0, %s183
      %s201 = sphi 0, %s201
      %s203 = sphi 0, %s201
      %s204 = sphi 0, %s203
      %s218 = sphi 0, %s204
      %s222 = sphi 0, %s222
      %s224 = sphi 0, %s222
      %s225 = sphi 0, %s224
      %s239 = sphi 0, %s225
      %s243 = sphi 0, %s243
      %s245 = sphi 0, %s243
      %s246 = sphi 0, %s245
      %s260 = sphi 0, %s246
      %s266 = sphi 0, %s268
      %s269 = sphi 0, %s266
      %s270 = sphi 0, %s269
      %s286 = sphi 0, %s270
    $region4: #{tpu_custom_call.1} parent=1 // loop_header_branch
      %23 = sbr.rel (%p21) target = $region8
    $region5: #{tpu_custom_call.1} parent=1 // loop_body
      %s25 = ssub.s32 %s20, 1
      %s26 = ssub.s32 %s20, 2
      %s27 = sadd.s32 %s20, 1
      %s28 = ssub.s32 %s20, %s27
      %p29 = scmp.eq.s32.totalorder %s28, 0
      %s31 = sadd.s32 %s30, 1
      %s32 = scalar_select %p29, %s30, %s31
      %p35 = pneg %p29
      %p36 = scmp.eq.s32.totalorder %s20, 1
      %p37 = por %p35, %p36
      %p38 = scmp.ne.s32.totalorder %s30, %s33
      %p39 = scmp.eq.s32.totalorder %s20, 0
      %p40 = por %p38, %p39
      %p41 = scmp.ne.s32.totalorder %s30, %s33
      %p42 = scmp.eq.s32.totalorder %s25, 1
      %p43 = por %p41, %p42
      %p44 = scmp.ne.s32.totalorder %s33, %s34
      %p45 = scmp.eq.s32.totalorder %s25, 0
      %p46 = por %p44, %p45
      %p47 = scmp.ne.s32.totalorder %s33, %s34
      %p48 = scmp.eq.s32.totalorder %s26, 1
      %p49 = por %p47, %p48
      %p51 = scmp.ne.s32.totalorder %s34, %s50
      %p52 = scmp.eq.s32.totalorder %s26, 0
      %p53 = por %p51, %p52
      %s55 = sadd.s32 %s54, 1
      %p58 = scmp.eq.s32.totalorder %s20, 1
      %p59 = scmp.ne.s32.totalorder %s54, %s56
      %p60 = scmp.eq.s32.totalorder %s20, 0
      %p61 = por %p59, %p60
      %p62 = scmp.ne.s32.totalorder %s54, %s56
      %p63 = scmp.eq.s32.totalorder %s25, 1
      %p64 = por %p62, %p63
      %p65 = scmp.ne.s32.totalorder %s56, %s57
      %p66 = scmp.eq.s32.totalorder %s25, 0
      %p67 = por %p65, %p66
      %p68 = scmp.ne.s32.totalorder %s56, %s57
      %p69 = scmp.eq.s32.totalorder %s26, 1
      %p70 = por %p68, %p69
      %p72 = scmp.ne.s32.totalorder %s57, %s71
      %p73 = scmp.eq.s32.totalorder %s26, 0
      %p74 = por %p72, %p73
      %s76 = sadd.s32 %s75, 1
      %p79 = scmp.eq.s32.totalorder %s20, 1
      %p80 = scmp.ne.s32.totalorder %s75, %s77
      %p81 = scmp.eq.s32.totalorder %s20, 0
      %p82 = por %p80, %p81
      %p83 = scmp.ne.s32.totalorder %s75, %s77
      %p84 = scmp.eq.s32.totalorder %s25, 1
      %p85 = por %p83, %p84
      %p86 = scmp.ne.s32.totalorder %s77, %s78
      %p87 = scmp.eq.s32.totalorder %s25, 0
      %p88 = por %p86, %p87
      %p89 = scmp.ne.s32.totalorder %s77, %s78
      %p90 = scmp.eq.s32.totalorder %s26, 1
      %p91 = por %p89, %p90
      %p93 = scmp.ne.s32.totalorder %s78, %s92
      %p94 = scmp.eq.s32.totalorder %s26, 0
      %p95 = por %p93, %p94
      %s97 = sadd.s32 %s96, 1
      %p100 = scmp.eq.s32.totalorder %s20, 1
      %p101 = scmp.ne.s32.totalorder %s96, %s98
      %p102 = scmp.eq.s32.totalorder %s20, 0
      %p103 = por %p101, %p102
      %p104 = scmp.ne.s32.totalorder %s96, %s98
      %p105 = scmp.eq.s32.totalorder %s25, 1
      %p106 = por %p104, %p105
      %p107 = scmp.ne.s32.totalorder %s98, %s99
      %p108 = scmp.eq.s32.totalorder %s25, 0
      %p109 = por %p107, %p108
      %p110 = scmp.ne.s32.totalorder %s98, %s99
      %p111 = scmp.eq.s32.totalorder %s26, 1
      %p112 = por %p110, %p111
      %p114 = scmp.ne.s32.totalorder %s99, %s113
      %p115 = scmp.eq.s32.totalorder %s26, 0
      %p116 = por %p114, %p115
      %s118 = sadd.s32 %s117, 1
      %p121 = scmp.eq.s32.totalorder %s20, 1
      %p122 = scmp.ne.s32.totalorder %s117, %s119
      %p123 = scmp.eq.s32.totalorder %s20, 0
      %p124 = por %p122, %p123
      %p125 = scmp.ne.s32.totalorder %s117, %s119
      %p126 = scmp.eq.s32.totalorder %s25, 1
      %p127 = por %p125, %p126
      %p128 = scmp.ne.s32.totalorder %s119, %s120
      %p129 = scmp.eq.s32.totalorder %s25, 0
      %p130 = por %p128, %p129
      %p131 = scmp.ne.s32.totalorder %s119, %s120
      %p132 = scmp.eq.s32.totalorder %s26, 1
      %p133 = por %p131, %p132
      %p135 = scmp.ne.s32.totalorder %s120, %s134
      %p136 = scmp.eq.s32.totalorder %s26, 0
      %p137 = por %p135, %p136
      %s139 = sadd.s32 %s138, 1
      %p142 = scmp.eq.s32.totalorder %s20, 1
      %p143 = scmp.ne.s32.totalorder %s138, %s140
      %p144 = scmp.eq.s32.totalorder %s20, 0
      %p145 = por %p143, %p144
      %p146 = scmp.ne.s32.totalorder %s138, %s140
      %p147 = scmp.eq.s32.totalorder %s25, 1
      %p148 = por %p146, %p147
      %p149 = scmp.ne.s32.totalorder %s140, %s141
      %p150 = scmp.eq.s32.totalorder %s25, 0
      %p151 = por %p149, %p150
      %p152 = scmp.ne.s32.totalorder %s140, %s141
      %p153 = scmp.eq.s32.totalorder %s26, 1
      %p154 = por %p152, %p153
      %p156 = scmp.ne.s32.totalorder %s141, %s155
      %p157 = scmp.eq.s32.totalorder %s26, 0
      %p158 = por %p156, %p157
      %s160 = sadd.s32 %s159, 1
      %p163 = scmp.eq.s32.totalorder %s20, 1
      %p164 = scmp.ne.s32.totalorder %s159, %s161
      %p165 = scmp.eq.s32.totalorder %s20, 0
      %p166 = por %p164, %p165
      %p167 = scmp.ne.s32.totalorder %s159, %s161
      %p168 = scmp.eq.s32.totalorder %s25, 1
      %p169 = por %p167, %p168
      %p170 = scmp.ne.s32.totalorder %s161, %s162
      %p171 = scmp.eq.s32.totalorder %s25, 0
      %p172 = por %p170, %p171
      %p173 = scmp.ne.s32.totalorder %s161, %s162
      %p174 = scmp.eq.s32.totalorder %s26, 1
      %p175 = por %p173, %p174
      %p177 = scmp.ne.s32.totalorder %s162, %s176
      %p178 = scmp.eq.s32.totalorder %s26, 0
      %p179 = por %p177, %p178
      %s181 = sadd.s32 %s180, 1
      %p184 = scmp.eq.s32.totalorder %s20, 1
      %p185 = scmp.ne.s32.totalorder %s180, %s182
      %p186 = scmp.eq.s32.totalorder %s20, 0
      %p187 = por %p185, %p186
      %p188 = scmp.ne.s32.totalorder %s180, %s182
      %p189 = scmp.eq.s32.totalorder %s25, 1
      %p190 = por %p188, %p189
      %p191 = scmp.ne.s32.totalorder %s182, %s183
      %p192 = scmp.eq.s32.totalorder %s25, 0
      %p193 = por %p191, %p192
      %p194 = scmp.ne.s32.totalorder %s182, %s183
      %p195 = scmp.eq.s32.totalorder %s26, 1
      %p196 = por %p194, %p195
      %p198 = scmp.ne.s32.totalorder %s183, %s197
      %p199 = scmp.eq.s32.totalorder %s26, 0
      %p200 = por %p198, %p199
      %s202 = sadd.s32 %s201, 1
      %p205 = scmp.eq.s32.totalorder %s20, 1
      %p206 = scmp.ne.s32.totalorder %s201, %s203
      %p207 = scmp.eq.s32.totalorder %s20, 0
      %p208 = por %p206, %p207
      %p209 = scmp.ne.s32.totalorder %s201, %s203
      %p210 = scmp.eq.s32.totalorder %s25, 1
      %p211 = por %p209, %p210
      %p212 = scmp.ne.s32.totalorder %s203, %s204
      %p213 = scmp.eq.s32.totalorder %s25, 0
      %p214 = por %p212, %p213
      %p215 = scmp.ne.s32.totalorder %s203, %s204
      %p216 = scmp.eq.s32.totalorder %s26, 1
      %p217 = por %p215, %p216
      %p219 = scmp.ne.s32.totalorder %s204, %s218
      %p220 = scmp.eq.s32.totalorder %s26, 0
      %p221 = por %p219, %p220
      %s223 = sadd.s32 %s222, 1
      %p226 = scmp.eq.s32.totalorder %s20, 1
      %p227 = scmp.ne.s32.totalorder %s222, %s224
      %p228 = scmp.eq.s32.totalorder %s20, 0
      %p229 = por %p227, %p228
      %p230 = scmp.ne.s32.totalorder %s222, %s224
      %p231 = scmp.eq.s32.totalorder %s25, 1
      %p232 = por %p230, %p231
      %p233 = scmp.ne.s32.totalorder %s224, %s225
      %p234 = scmp.eq.s32.totalorder %s25, 0
      %p235 = por %p233, %p234
      %p236 = scmp.ne.s32.totalorder %s224, %s225
      %p237 = scmp.eq.s32.totalorder %s26, 1
      %p238 = por %p236, %p237
      %p240 = scmp.ne.s32.totalorder %s225, %s239
      %p241 = scmp.eq.s32.totalorder %s26, 0
      %p242 = por %p240, %p241
      %s244 = sadd.s32 %s243, 1
      %p247 = scmp.eq.s32.totalorder %s20, 1
      %p248 = scmp.ne.s32.totalorder %s243, %s245
      %p249 = scmp.eq.s32.totalorder %s20, 0
      %p250 = por %p248, %p249
      %p251 = scmp.ne.s32.totalorder %s243, %s245
      %p252 = scmp.eq.s32.totalorder %s25, 1
      %p253 = por %p251, %p252
      %p254 = scmp.ne.s32.totalorder %s245, %s246
      %p255 = scmp.eq.s32.totalorder %s25, 0
      %p256 = por %p254, %p255
      %p257 = scmp.ne.s32.totalorder %s245, %s246
      %p258 = scmp.eq.s32.totalorder %s26, 1
      %p259 = por %p257, %p258
      %p261 = scmp.ne.s32.totalorder %s246, %s260
      %p262 = scmp.eq.s32.totalorder %s26, 0
      %p263 = por %p261, %p262
      %s264 = ssub.s32 %s20, %s27
      %p265 = scmp.eq.s32.totalorder %s264, 0
      %s267 = sadd.s32 %s266, 1
      %s268 = scalar_select %p265, %s266, %s267
      %p271 = pneg %p265
      %p272 = scmp.eq.s32.totalorder %s20, 1
      %p273 = por %p271, %p272
      %p274 = scmp.ne.s32.totalorder %s266, %s269
      %p275 = scmp.eq.s32.totalorder %s20, 0
      %p276 = por %p274, %p275
      %p277 = scmp.ne.s32.totalorder %s266, %s269
      %p278 = scmp.eq.s32.totalorder %s25, 1
      %p279 = por %p277, %p278
      %p280 = scmp.ne.s32.totalorder %s269, %s270
      %p281 = scmp.eq.s32.totalorder %s25, 0
      %p282 = por %p280, %p281
      %p283 = scmp.ne.s32.totalorder %s269, %s270
      %p284 = scmp.eq.s32.totalorder %s26, 1
      %p285 = por %p283, %p284
      %p287 = scmp.ne.s32.totalorder %s270, %s286
      %p288 = scmp.eq.s32.totalorder %s26, 0
      %p289 = por %p287, %p288
      %p290 = scmp.le.s32.totalorder 1, %s20
      %p291 = scmp.lt.s32.totalorder %s20, 3
      %p292 = pnand %p290, %p291
      %p293 = pneg %p292
      // Predicated region
      $region9: #{tpu_custom_call.1} parent=5 // pred_check
        _
      $region10: #{tpu_custom_call.1} parent=5 // pred_check_branch
        %295 = sbr.rel (%p292) target = $region12
      $region11: #{tpu_custom_call.1} parent=5 // pred_region
        %s296 = ssub.s32 %s20, 1
        // Predicated region
        $region13: #{tpu_custom_call.1} parent=11 // pred_check
          %p297 = pneg %p67
        $region14: #{tpu_custom_call.1} parent=11 // pred_check_branch
          %299 = sbr.rel (%p297) target = $region16
        $region15: #{tpu_custom_call.1} parent=11 // pred_region
          _
        $region16: #{tpu_custom_call.1} parent=11 // pred_fallthru
          _
        // Predicated region
        $region17: #{tpu_custom_call.1} parent=11 // pred_check
          %p300 = pneg %p88
        $region18: #{tpu_custom_call.1} parent=11 // pred_check_branch
          %302 = sbr.rel (%p300) target = $region20
        $region19: #{tpu_custom_call.1} parent=11 // pred_region
          _
        $region20: #{tpu_custom_call.1} parent=11 // pred_fallthru
          _
        // Predicated region
        $region21: #{tpu_custom_call.1} parent=11 // pred_check
          %p303 = pneg %p109
        $region22: #{tpu_custom_call.1} parent=11 // pred_check_branch
          %305 = sbr.rel (%p303) target = $region24
        $region23: #{tpu_custom_call.1} parent=11 // pred_region
          _
        $region24: #{tpu_custom_call.1} parent=11 // pred_fallthru
          _
        // Predicated region
        $region25: #{tpu_custom_call.1} parent=11 // pred_check
          %p306 = pneg %p130
        $region26: #{tpu_custom_call.1} parent=11 // pred_check_branch
          %308 = sbr.rel (%p306) target = $region28
        $region27: #{tpu_custom_call.1} parent=11 // pred_region
          _
        $region28: #{tpu_custom_call.1} parent=11 // pred_fallthru
          _
        // Predicated region
        $region29: #{tpu_custom_call.1} parent=11 // pred_check
          %p309 = pneg %p151
        $region30: #{tpu_custom_call.1} parent=11 // pred_check_branch
          %311 = sbr.rel (%p309) target = $region32
        $region31: #{tpu_custom_call.1} parent=11 // pred_region
          _
        $region32: #{tpu_custom_call.1} parent=11 // pred_fallthru
          _
        // Predicated region
        $region33: #{tpu_custom_call.1} parent=11 // pred_check
          %p312 = pneg %p172
        $region34: #{tpu_custom_call.1} parent=11 // pred_check_branch
          %314 = sbr.rel (%p312) target = $region36
        $region35: #{tpu_custom_call.1} parent=11 // pred_region
          _
        $region36: #{tpu_custom_call.1} parent=11 // pred_fallthru
          _
        // Predicated region
        $region37: #{tpu_custom_call.1} parent=11 // pred_check
          %p315 = pneg %p193
        $region38: #{tpu_custom_call.1} parent=11 // pred_check_branch
          %317 = sbr.rel (%p315) target = $region40
        $region39: #{tpu_custom_call.1} parent=11 // pred_region
          _
        $region40: #{tpu_custom_call.1} parent=11 // pred_fallthru
          _
        // Predicated region
        $region41: #{tpu_custom_call.1} parent=11 // pred_check
          %p318 = pneg %p214
        $region42: #{tpu_custom_call.1} parent=11 // pred_check_branch
          %320 = sbr.rel (%p318) target = $region44
        $region43: #{tpu_custom_call.1} parent=11 // pred_region
          _
        $region44: #{tpu_custom_call.1} parent=11 // pred_fallthru
          _
        // Predicated region
        $region45: #{tpu_custom_call.1} parent=11 // pred_check
          %p321 = pneg %p235
        $region46: #{tpu_custom_call.1} parent=11 // pred_check_branch
          %323 = sbr.rel (%p321) target = $region48
        $region47: #{tpu_custom_call.1} parent=11 // pred_region
          _
        $region48: #{tpu_custom_call.1} parent=11 // pred_fallthru
          _
        // Predicated region
        $region49: #{tpu_custom_call.1} parent=11 // pred_check
          %p324 = pneg %p256
        $region50: #{tpu_custom_call.1} parent=11 // pred_check_branch
          %326 = sbr.rel (%p324) target = $region52
        $region51: #{tpu_custom_call.1} parent=11 // pred_region
          _
        $region52: #{tpu_custom_call.1} parent=11 // pred_fallthru
          _
      $region12: #{tpu_custom_call.1} parent=5 // pred_fallthru
        _
      %p327 = scmp.lt.s32.totalorder %s20, 2
      // Predicated region
      $region53: #{tpu_custom_call.1} parent=5 // pred_check
        %p328 = pneg %p327
      $region54: #{tpu_custom_call.1} parent=5 // pred_check_branch
        %330 = sbr.rel (%p328) target = $region56
      $region55: #{tpu_custom_call.1} parent=5 // pred_region
        // Predicated region
        $region57: #{tpu_custom_call.1} parent=55 // pred_check
          %p331 = pneg %p40
        $region58: #{tpu_custom_call.1} parent=55 // pred_check_branch
          %333 = sbr.rel (%p331) target = $region60
        $region59: #{tpu_custom_call.1} parent=55 // pred_region
          %p334 = scmp.lt.s32.totalorder %s20, 1
          %s335 = scalar_select %p334, %s20, 1
          %s336 = smul.addr %s335, 2
          %s337 = smul.addr %s336, 8
          %s338 = scalar_lea.vmem %s0, %s337
        $region60: #{tpu_custom_call.1} parent=55 // pred_fallthru
          _
      $region56: #{tpu_custom_call.1} parent=5 // pred_fallthru
        _
      %p339 = scmp.le.s32.totalorder 1, %s20
      %p340 = scmp.lt.s32.totalorder %s20, 3
      %p341 = pnand %p339, %p340
      %p342 = pneg %p341
      // Predicated region
      $region61: #{tpu_custom_call.1} parent=5 // pred_check
        _
      $region62: #{tpu_custom_call.1} parent=5 // pred_check_branch
        %344 = sbr.rel (%p341) target = $region64
      $region63: #{tpu_custom_call.1} parent=5 // pred_region
        %s345 = ssub.s32 %s20, 1
        %p346 = scmp.lt.s32.totalorder %s25, 1
        %s347 = scalar_select %p346, %s25, 1
        %s348 = smul.addr %s347, 2
        %s349 = smul.addr %s348, 8
        %s350 = scalar_lea.vmem %s0, %s349
        %p351 = pneg %p46
        %p352 = pneg %p43
        %p353 = pneg %p67
        %p354 = pneg %p64
        %p355 = pneg %p88
        %p356 = pneg %p85
        %p357 = pneg %p109
        %p358 = pneg %p106
        %p359 = pneg %p130
        %p360 = pneg %p127
        %p361 = pneg %p151
        %p362 = pneg %p148
        %p363 = pneg %p172
        %p364 = pneg %p169
        %p365 = pneg %p193
        %p366 = pneg %p190
        %p367 = pneg %p214
        %p368 = pneg %p211
        %p369 = pneg %p235
        %p370 = pneg %p232
        %p371 = pneg %p256
        %p372 = pneg %p253
        %p373 = pneg %p282
        %p374 = pneg %p279
        %s375 = sand.u32 %s269, 1
        %s376 = scalar_lea.sflag [#allocation3], %s375
        %s377 = sand.u32 %s269, 1
        %s378 = smul.addr %s377, 16
        %s379 = scalar_lea.vmem [#allocation2], %s378
        %p380 = scmp.lt.s32.totalorder %s25, 1
        %s381 = scalar_select %p380, %s25, 1
        %s382 = smul.addr %s381, 2
        %s383 = smul.addr %s382, 8
        %s384 = scalar_lea.vmem %s0, %s383
        %v385 = vld [vmem:[%s384] sm:$0xff]
        %v386 = vld [vmem:[%s384 + $0x8] sm:$0xff]
        %v387 = vld [vmem:[%s1] sm:$0x1]
        %v388 = vld [vmem:[%s2] sm:$0x1]
        %vm389 = vcmask 261120
        %v390 = vsel %vm389, %v385, 0.0
        %391 = vadd.xlane.f32.xlu0 %v390
        %v392 = vpop.xlane.xlu0 %391
        %v393 = vsel %vm389, %v386, 0.0
        %394 = vadd.xlane.f32.xlu0 %v393
        %v395 = vpop.xlane.xlu0 %394
        %v396 = vmul.f32 %v392, 0.03125
        %v397 = vmul.f32 %v395, 0.03125
        %v398 = vmul.f32 %v385, %v385
        %v399 = vmul.f32 %v386, %v386
        %v400 = vsel %vm389, %v398, 0.0
        %401 = vadd.xlane.f32.xlu0 %v400
        %v402 = vpop.xlane.xlu0 %401
        %v403 = vsel %vm389, %v399, 0.0
        %404 = vadd.xlane.f32.xlu0 %v403
        %v405 = vpop.xlane.xlu0 %404
        %v406 = vmul.f32 %v402, 0.03125
        %v407 = vmul.f32 %v405, 0.03125
        %v408 = vmul.f32 %v396, %v396
        %v409 = vmul.f32 %v397, %v397
        %v410 = vsub.f32 %v406, %v408
        %v411 = vsub.f32 %v407, %v409
        %v412 = vadd.f32 %v410, 1e-05
        %v413 = vadd.f32 %v411, 1e-05
        %v414 = vrsqrt.pop %v412
        %v415 = vrsqrt.pop %v413
        %v417 = vlaneseq
        %v418 = vshrl.u32 %v417, 7
        %v419 = vsub.s32 0, %v418
        %v420 = vrot.slane %v387, %v419
        %v422 = vmul.f32 %v414, %v420
        %v423 = vmul.f32 %v415, %v420
        %v424 = vmul.f32 %v385, %v422
        %v425 = vmul.f32 %v386, %v423
        %v426 = vmul.f32 %v396, %v422
        %v427 = vmul.f32 %v397, %v423
        %v429 = vlaneseq
        %v430 = vshrl.u32 %v429, 7
        %v431 = vsub.s32 0, %v430
        %v432 = vrot.slane %v388, %v431
        %v434 = vsub.f32 %v432, %v426
        %v435 = vsub.f32 %v432, %v427
        %v436 = vadd.f32 %v424, %v434
        %v437 = vadd.f32 %v425, %v435
        %v438 = vld [vmem:[%s3] sm:$0xff]
        %v439 = vld [vmem:[%s3 + $0x8] sm:$0xff]
        %vm440 = vcmask 130048
        %v442 = vsel %vm440, %v438, 0
        %v445 = vsel %vm440, %v439, 0
        %447 = vmatprep.subr.mxu0 0.0
        %448 = vmatpush1.msra.mxu0 %v436
        %449 = vmatprep.subr.mxu0 0.0
        %450 = vmatpush1.msra.mxu0 %v437
        %451 = vmatprep.subr.mxu0 0.0
        %452 = vmatpush1.msra.mxu0 0.0
        %453 = vmatprep.subr.mxu0 0.0
        %454 = vmatpush1.msra.mxu0 0.0
        %455 = vmatprep.subr.mxu0 0.0
        %456 = vmatpush1.msra.mxu0 0.0
        %457 = vmatprep.subr.mxu0 0.0
        %458 = vmatpush1.msra.mxu0 0.0
        %459 = vmatprep.subr.mxu0 0.0
        %460 = vmatpush1.msra.mxu0 0.0
        %461 = vmatprep.subr.mxu0 0.0
        %462 = vmatpush1.msra.mxu0 0.0
        %463 = vmatprep.subr.mxu0 0.0
        %464 = vmatpush1.msra.mxu0 0.0
        %465 = vmatprep.subr.mxu0 0.0
        %466 = vmatpush1.msra.mxu0 0.0
        %467 = vmatprep.subr.mxu0 0.0
        %468 = vmatpush1.msra.mxu0 0.0
        %469 = vmatprep.subr.mxu0 0.0
        %470 = vmatpush1.msra.mxu0 0.0
        %471 = vmatprep.subr.mxu0 0.0
        %472 = vmatpush1.msra.mxu0 0.0
        %473 = vmatprep.subr.mxu0 0.0
        %474 = vmatpush1.msra.mxu0 0.0
        %475 = vmatprep.subr.mxu0 0.0
        %476 = vmatpush1.msra.mxu0 0.0
        %477 = vmatprep.subr.mxu0 0.0
        %478 = vmatpush1.msra.mxu0 0.0
        %479 = vmatprep.subr.mxu0 0.0
        %480 = vmatpush1.msra.mxu0 0.0
        %481 = vmatprep.subr.mxu0 0.0
        %482 = vmatpush1.msra.mxu0 0.0
        %483 = vmatprep.subr.mxu0 0.0
        %484 = vmatpush1.msra.mxu0 0.0
        %485 = vmatprep.subr.mxu0 0.0
        %486 = vmatpush1.msra.mxu0 0.0
        %487 = vmatprep.subr.mxu0 0.0
        %488 = vmatpush1.msra.mxu0 0.0
        %489 = vmatprep.subr.mxu0 0.0
        %490 = vmatpush1.msra.mxu0 0.0
        %491 = vmatprep.subr.mxu0 0.0
        %492 = vmatpush1.msra.mxu0 0.0
        %493 = vmatprep.subr.mxu0 0.0
        %494 = vmatpush1.msra.mxu0 0.0
        %495 = vmatprep.subr.mxu0 0.0
        %496 = vmatpush1.msra.mxu0 0.0
        %497 = vmatprep.subr.mxu0 0.0
        %498 = vmatpush1.msra.mxu0 0.0
        %499 = vmatprep.subr.mxu0 0.0
        %500 = vmatpush1.msra.mxu0 0.0
        %501 = vmatprep.subr.mxu0 0.0
        %502 = vmatpush1.msra.mxu0 0.0
        %503 = vmatprep.subr.mxu0 0.0
        %504 = vmatpush1.msra.mxu0 0.0
        %505 = vmatprep.subr.mxu0 0.0
        %506 = vmatpush1.msra.mxu0 0.0
        %507 = vmatprep.subr.mxu0 0.0
        %508 = vmatpush1.msra.mxu0 0.0
        %509 = vmatprep.subr.mxu0 0.0
        %510 = vmatpush1.msra.mxu0 0.0
        %511 = vmatprep.mubr.f32.mxu0 0.0
        %512 = vmatmul.mubr.f32.gmra.mrb[0].mxu0 %v442
        %v513 = vpop.f32.mrb[0].mxu0
        %v514 = vadd.f32 0.0, %v513
        %v515 = vpop.f32.mrb[0].mxu0
        %516 = vmatprep.mubr.f32.mxu0 0.0
        %517 = vmatmul.mubr.f32.gmra.mrb[0].mxu0 %v445
        %v518 = vpop.f32.mrb[0].mxu0
        %v519 = vadd.f32 0.0, %v518
        %v520 = vpop.f32.mrb[0].mxu0
        %521 = vdwg.mxu0
        %v522 = vld [vmem:[%s4] sm:$0x1]
        %v523 = vld [vmem:[%s5] sm:$0x1]
        %v524 = vsel %vm389, %v514, 0.0
        %525 = vadd.xlane.f32.xlu0 %v524
        %v526 = vpop.xlane.xlu0 %525
        %v527 = vsel %vm389, %v519, 0.0
        %528 = vadd.xlane.f32.xlu0 %v527
        %v529 = vpop.xlane.xlu0 %528
        %v530 = vmul.f32 %v526, 0.03125
        %v531 = vmul.f32 %v529, 0.03125
        %v532 = vmul.f32 %v514, %v514
        %v533 = vmul.f32 %v519, %v519
        %v534 = vsel %vm389, %v532, 0.0
        %535 = vadd.xlane.f32.xlu0 %v534
        %v536 = vpop.xlane.xlu0 %535
        %v537 = vsel %vm389, %v533, 0.0
        %538 = vadd.xlane.f32.xlu0 %v537
        %v539 = vpop.xlane.xlu0 %538
        %v540 = vmul.f32 %v536, 0.03125
        %v541 = vmul.f32 %v539, 0.03125
        %v542 = vmul.f32 %v530, %v530
        %v543 = vmul.f32 %v531, %v531
        %v544 = vsub.f32 %v540, %v542
        %v545 = vsub.f32 %v541, %v543
        %v546 = vadd.f32 %v544, 1e-05
        %v547 = vadd.f32 %v545, 1e-05
        %v548 = vrsqrt.pop %v546
        %v549 = vrsqrt.pop %v547
        %v551 = vlaneseq
        %v552 = vshrl.u32 %v551, 7
        %v553 = vsub.s32 0, %v552
        %v554 = vrot.slane %v522, %v553
        %v556 = vmul.f32 %v548, %v554
        %v557 = vmul.f32 %v549, %v554
        %v558 = vmul.f32 %v514, %v556
        %v559 = vmul.f32 %v519, %v557
        %v560 = vmul.f32 %v530, %v556
        %v561 = vmul.f32 %v531, %v557
        %v563 = vlaneseq
        %v564 = vshrl.u32 %v563, 7
        %v565 = vsub.s32 0, %v564
        %v566 = vrot.slane %v523, %v565
        %v568 = vsub.f32 %v566, %v560
        %v569 = vsub.f32 %v566, %v561
        %v570 = vadd.f32 %v558, %v568
        %v571 = vadd.f32 %v559, %v569
        %v572 = vld [vmem:[%s6] sm:$0xff]
        %v573 = vld [vmem:[%s6 + $0x8] sm:$0xff]
        %v574 = vld [vmem:[%s6 + $0x10] sm:$0xff]
        %v575 = vld [vmem:[%s6 + $0x18] sm:$0xff]
        %v576 = vld [vmem:[%s7] sm:$0x1]
        %v578 = vlaneseq
        %v579 = vshrl.u32 %v578, 7
        %v580 = vsub.s32 0, %v579
        %v581 = vrot.slane %v576, %v580
        %v584 = vsel %vm389, %v570, 0
        %v587 = vsel %vm389, %v571, 0
        %589 = vmatprep.subr.mxu0 0.0
        %590 = vmatpush1.msra.mxu0 %v572
        %591 = vmatprep.subr.mxu0 0.0
        %592 = vmatpush1.msra.mxu0 %v573
        %593 = vmatprep.subr.mxu0 0.0
        %594 = vmatpush1.msra.mxu0 %v574
        %595 = vmatprep.subr.mxu0 0.0
        %596 = vmatpush1.msra.mxu0 %v575
        %597 = vmatprep.subr.mxu0 0.0
        %598 = vmatpush1.msra.mxu0 0.0
        %599 = vmatprep.subr.mxu0 0.0
        %600 = vmatpush1.msra.mxu0 0.0
        %601 = vmatprep.subr.mxu0 0.0
        %602 = vmatpush1.msra.mxu0 0.0
        %603 = vmatprep.subr.mxu0 0.0
        %604 = vmatpush1.msra.mxu0 0.0
        %605 = vmatprep.subr.mxu0 0.0
        %606 = vmatpush1.msra.mxu0 0.0
        %607 = vmatprep.subr.mxu0 0.0
        %608 = vmatpush1.msra.mxu0 0.0
        %609 = vmatprep.subr.mxu0 0.0
        %610 = vmatpush1.msra.mxu0 0.0
        %611 = vmatprep.subr.mxu0 0.0
        %612 = vmatpush1.msra.mxu0 0.0
        %613 = vmatprep.subr.mxu0 0.0
        %614 = vmatpush1.msra.mxu0 0.0
        %615 = vmatprep.subr.mxu0 0.0
        %616 = vmatpush1.msra.mxu0 0.0
        %617 = vmatprep.subr.mxu0 0.0
        %618 = vmatpush1.msra.mxu0 0.0
        %619 = vmatprep.subr.mxu0 0.0
        %620 = vmatpush1.msra.mxu0 0.0
        %621 = vmatprep.subr.mxu0 0.0
        %622 = vmatpush1.msra.mxu0 0.0
        %623 = vmatprep.subr.mxu0 0.0
        %624 = vmatpush1.msra.mxu0 0.0
        %625 = vmatprep.subr.mxu0 0.0
        %626 = vmatpush1.msra.mxu0 0.0
        %627 = vmatprep.subr.mxu0 0.0
        %628 = vmatpush1.msra.mxu0 0.0
        %629 = vmatprep.subr.mxu0 0.0
        %630 = vmatpush1.msra.mxu0 0.0
        %631 = vmatprep.subr.mxu0 0.0
        %632 = vmatpush1.msra.mxu0 0.0
        %633 = vmatprep.subr.mxu0 0.0
        %634 = vmatpush1.msra.mxu0 0.0
        %635 = vmatprep.subr.mxu0 0.0
        %636 = vmatpush1.msra.mxu0 0.0
        %637 = vmatprep.subr.mxu0 0.0
        %638 = vmatpush1.msra.mxu0 0.0
        %639 = vmatprep.subr.mxu0 0.0
        %640 = vmatpush1.msra.mxu0 0.0
        %641 = vmatprep.subr.mxu0 0.0
        %642 = vmatpush1.msra.mxu0 0.0
        %643 = vmatprep.subr.mxu0 0.0
        %644 = vmatpush1.msra.mxu0 0.0
        %645 = vmatprep.subr.mxu0 0.0
        %646 = vmatpush1.msra.mxu0 0.0
        %647 = vmatprep.subr.mxu0 0.0
        %648 = vmatpush1.msra.mxu0 0.0
        %649 = vmatprep.subr.mxu0 0.0
        %650 = vmatpush1.msra.mxu0 0.0
        %651 = vmatprep.subr.mxu0 0.0
        %652 = vmatpush1.msra.mxu0 0.0
        %653 = vmatprep.mubr.f32.mxu0 0.0
        %654 = vmatmul.mubr.f32.gmra.mrb[0].mxu0 %v584
        %v655 = vpop.f32.mrb[0].mxu0
        %v656 = vadd.f32 %v581, %v655
        %v657 = vpop.f32.mrb[0].mxu0
        %658 = vmatprep.mubr.f32.mxu0 0.0
        %659 = vmatmul.mubr.f32.gmra.mrb[0].mxu0 %v587
        %v660 = vpop.f32.mrb[0].mxu0
        %v661 = vadd.f32 %v581, %v660
        %v662 = vpop.f32.mrb[0].mxu0
        %663 = vdwg.mxu0
        %v664 = vmin.f32 %v656, 20.0
        %v665 = vmin.f32 %v661, 20.0
        %v666 = vmul.f32 %v664, 1.442695
        %v667 = vpow.pop %v666
        %v668 = vmul.f32 %v665, 1.442695
        %v669 = vpow.pop %v668
        %v670 = vadd.f32 %v667, 2.0
        %v671 = vadd.f32 %v669, 2.0
        %v672 = vmul.f32 %v667, %v670
        %v673 = vmul.f32 %v669, %v671
        %v674 = vadd.f32 %v672, 2.0
        %v675 = vadd.f32 %v673, 2.0
        %v676 = vrcp.pop %v674
        %v677 = vrcp.pop %v675
        %v678 = vmul.f32 %v672, %v676
        %v679 = vmul.f32 %v673, %v677
        %vm680 = vcmp.gt.f32.partialorder %v656, 20.0
        %vm681 = vcmp.gt.f32.partialorder %v661, 20.0
        %v682 = vmul.f32 %v656, %v678
        %v683 = vmul.f32 %v661, %v679
        %v684 = vsel %vm680, %v656, %v682
        %v685 = vsel %vm681, %v661, %v683
        %v686 = vld [vmem:[%s8] sm:$0xff]
        %v687 = vld [vmem:[%s8 + $0x8] sm:$0xff]
        %v688 = vld [vmem:[%s8 + $0x10] sm:$0xff]
        %v689 = vld [vmem:[%s8 + $0x18] sm:$0xff]
        %v690 = vld [vmem:[%s8 + $0x20] sm:$0xff]
        %v691 = vld [vmem:[%s8 + $0x28] sm:$0xff]
        %v692 = vld [vmem:[%s8 + $0x30] sm:$0xff]
        %v693 = vld [vmem:[%s8 + $0x38] sm:$0xff]
        %v694 = vld [vmem:[%s9] sm:$0x1]
        %v696 = vlaneseq
        %v697 = vshrl.u32 %v696, 7
        %v698 = vsub.s32 0, %v697
        %v699 = vrot.slane %v694, %v698
        %vm701 = vcmask 523264
        %v703 = vsel %vm701, %v684, 0
        %v706 = vsel %vm701, %v685, 0
        %708 = vmatprep.subr.mxu0 0.0
        %709 = vmatpush1.msra.mxu0 %v686
        %710 = vmatprep.subr.mxu0 0.0
        %711 = vmatpush1.msra.mxu0 %v687
        %712 = vmatprep.subr.mxu0 0.0
        %713 = vmatpush1.msra.mxu0 %v688
        %714 = vmatprep.subr.mxu0 0.0
        %715 = vmatpush1.msra.mxu0 %v689
        %716 = vmatprep.subr.mxu0 0.0
        %717 = vmatpush1.msra.mxu0 %v690
        %718 = vmatprep.subr.mxu0 0.0
        %719 = vmatpush1.msra.mxu0 %v691
        %720 = vmatprep.subr.mxu0 0.0
        %721 = vmatpush1.msra.mxu0 %v692
        %722 = vmatprep.subr.mxu0 0.0
        %723 = vmatpush1.msra.mxu0 %v693
        %724 = vmatprep.subr.mxu0 0.0
        %725 = vmatpush1.msra.mxu0 0.0
        %726 = vmatprep.subr.mxu0 0.0
        %727 = vmatpush1.msra.mxu0 0.0
        %728 = vmatprep.subr.mxu0 0.0
        %729 = vmatpush1.msra.mxu0 0.0
        %730 = vmatprep.subr.mxu0 0.0
        %731 = vmatpush1.msra.mxu0 0.0
        %732 = vmatprep.subr.mxu0 0.0
        %733 = vmatpush1.msra.mxu0 0.0
        %734 = vmatprep.subr.mxu0 0.0
        %735 = vmatpush1.msra.mxu0 0.0
        %736 = vmatprep.subr.mxu0 0.0
        %737 = vmatpush1.msra.mxu0 0.0
        %738 = vmatprep.subr.mxu0 0.0
        %739 = vmatpush1.msra.mxu0 0.0
        %740 = vmatprep.subr.mxu0 0.0
        %741 = vmatpush1.msra.mxu0 0.0
        %742 = vmatprep.subr.mxu0 0.0
        %743 = vmatpush1.msra.mxu0 0.0
        %744 = vmatprep.subr.mxu0 0.0
        %745 = vmatpush1.msra.mxu0 0.0
        %746 = vmatprep.subr.mxu0 0.0
        %747 = vmatpush1.msra.mxu0 0.0
        %748 = vmatprep.subr.mxu0 0.0
        %749 = vmatpush1.msra.mxu0 0.0
        %750 = vmatprep.subr.mxu0 0.0
        %751 = vmatpush1.msra.mxu0 0.0
        %752 = vmatprep.subr.mxu0 0.0
        %753 = vmatpush1.msra.mxu0 0.0
        %754 = vmatprep.subr.mxu0 0.0
        %755 = vmatpush1.msra.mxu0 0.0
        %756 = vmatprep.subr.mxu0 0.0
        %757 = vmatpush1.msra.mxu0 0.0
        %758 = vmatprep.subr.mxu0 0.0
        %759 = vmatpush1.msra.mxu0 0.0
        %760 = vmatprep.subr.mxu0 0.0
        %761 = vmatpush1.msra.mxu0 0.0
        %762 = vmatprep.subr.mxu0 0.0
        %763 = vmatpush1.msra.mxu0 0.0
        %764 = vmatprep.subr.mxu0 0.0
        %765 = vmatpush1.msra.mxu0 0.0
        %766 = vmatprep.subr.mxu0 0.0
        %767 = vmatpush1.msra.mxu0 0.0
        %768 = vmatprep.subr.mxu0 0.0
        %769 = vmatpush1.msra.mxu0 0.0
        %770 = vmatprep.subr.mxu0 0.0
        %771 = vmatpush1.msra.mxu0 0.0
        %772 = vmatprep.mubr.f32.mxu0 0.0
        %773 = vmatmul.mubr.f32.gmra.mrb[0].mxu0 %v703
        %v774 = vpop.f32.mrb[0].mxu0
        %v775 = vadd.f32 %v699, %v774
        %v776 = vpop.f32.mrb[0].mxu0
        %777 = vmatprep.mubr.f32.mxu0 0.0
        %778 = vmatmul.mubr.f32.gmra.mrb[0].mxu0 %v706
        %v779 = vpop.f32.mrb[0].mxu0
        %v780 = vadd.f32 %v699, %v779
        %v781 = vpop.f32.mrb[0].mxu0
        %782 = vdwg.mxu0
        %v783 = vld [vmem:[%s10] sm:$0x1]
        %v785 = vlaneseq
        %v786 = vshrl.u32 %v785, 7
        %v787 = vsub.s32 0, %v786
        %v788 = vrot.slane %v783, %v787
        %v790 = vmul.f32 %v788, %v775
        %v791 = vmul.f32 %v788, %v780
        %v792 = vadd.f32 %v385, %v790
        %v793 = vadd.f32 %v386, %v791
        %794 = vst.msk [vmem:[%s379] sm:$0xff] %vm389, %v792
        %795 = vst.msk [vmem:[%s379 + $0x8] sm:$0xff] %vm389, %v793
        %s796 = sand.u32 %s269, 1
        %s797 = scalar_lea.sflag [#allocation3], %s796
        %s798 = sand.u32 %s269, 1
        %s799 = smul.addr %s798, 16
        %s800 = scalar_lea.vmem [#allocation2], %s799
        // Predicated region
        $region65: #{tpu_custom_call.1} parent=63 // pred_check
          %p801 = pneg %p279
        $region66: #{tpu_custom_call.1} parent=63 // pred_check_branch
          %803 = sbr.rel (%p801) target = $region68
        $region67: #{tpu_custom_call.1} parent=63 // pred_region
          %s805 = ssub.s32 256, 256
          %806 = vsyncadd %s797, %s805
          %s807 = smul.addr %s25, 2
          %s808 = smul.addr %s807, 128
          %s809 = scalar_lea.hbm %s11, %s808
          %s810 = sshll.u32 %s800, 4
          %s811 = int_to_ptr.vmem [resolvable:$true] %s810
          %816 = dma.vmem_to_hbm [thread:$0]  %s811, 256, %s809, %s797, 128, 128, 8
        $region68: #{tpu_custom_call.1} parent=63 // pred_fallthru
          _
      $region64: #{tpu_custom_call.1} parent=5 // pred_fallthru
        _
      %p817 = scmp.le.s32.totalorder 2, %s20
      // Predicated region
      $region69: #{tpu_custom_call.1} parent=5 // pred_check
        %p818 = pneg %p817
      $region70: #{tpu_custom_call.1} parent=5 // pred_check_branch
        %820 = sbr.rel (%p818) target = $region72
      $region71: #{tpu_custom_call.1} parent=5 // pred_region
        %s821 = ssub.s32 %s20, 2
        // Predicated region
        $region73: #{tpu_custom_call.1} parent=71 // pred_check
          %p822 = pneg %p285
        $region74: #{tpu_custom_call.1} parent=71 // pred_check_branch
          %824 = sbr.rel (%p822) target = $region76
        $region75: #{tpu_custom_call.1} parent=71 // pred_region
          %s825 = sand.u32 %s270, 1
          %s826 = scalar_lea.sflag [#allocation3], %s825
          %s827 = sand.u32 %s270, 1
          %s828 = smul.addr %s827, 16
          %s829 = scalar_lea.vmem [#allocation2], %s828
          %830 = dma.done %s826, 256
        $region76: #{tpu_custom_call.1} parent=71 // pred_fallthru
          _
      $region72: #{tpu_custom_call.1} parent=5 // pred_fallthru
        _
    $region6: #{tpu_custom_call.1} parent=1 // loop_footer
      %s24 = sadd.s32 1, %s20
    $region7: #{tpu_custom_call.1} parent=1 // loop_footer_branch
      %19 = sbr.rel target = $region3
    $region8: #{tpu_custom_call.1} parent=1 // loop_exit
      _
    %831 = vsyncpa [#allocation3], 1
    %s832 = scalar_lea.sflag [#allocation3], 1
    %833 = vsyncpa %s832, 1

</llo_original>
